<compile_context>
chip_gen: v7x
topology: tpu7x:2x2x1
jax: 0.10.0
libtpu: 0.0.40
codegen_flags: <defaults>
</compile_context>

<pallas_src>
import jax
import jax.numpy as jnp
from jax.experimental import pallas as pl
from jax.experimental.pallas import tpu as pltpu


def _normalizer_kernel(x_ref, mean_ref, inv_scale_ref, o_ref):
    # x_ref/o_ref: (TM, F) tile of rows; mean_ref/inv_scale_ref: (1, F) resident
    # parameter blocks, row-broadcast against the tile.
    o_ref[...] = (x_ref[...] - mean_ref[...]) * inv_scale_ref[...]


def learned_input_normalizer(x, mean, scale, *, target_tile_bytes=2 * 1024 * 1024):
    """
    x:     (B, S, C, N)
    mean:  (C, N)
    scale: (C, N)
    returns (B, S, C, N) = (x - mean) / (scale + 1e-6)
    """
    B, S, C, N = x.shape
    M = B * S
    F = C * N

    xf = x.reshape(M, F)
    mean_f = mean.astype(x.dtype).reshape(1, F)
    # Hoisted exact reciprocal on the tiny parameter array (one-time cost).
    inv_scale_f = (1.0 / (scale.astype(jnp.float32) + 1e-6)).astype(x.dtype).reshape(1, F)

    # Pick TM: largest multiple of 8 whose (TM, F) tile is ~target_tile_bytes,
    # clamped to the full row count (single grid step for small inputs).
    bytes_per_row = F * x.dtype.itemsize
    tm = max(8, (target_tile_bytes // max(bytes_per_row, 1)) // 8 * 8)
    if tm >= M:
        tm = M  # full second-to-last dim: always satisfies the tiling constraint
    grid = (pl.cdiv(M, tm),)

    out = pl.pallas_call(
        _normalizer_kernel,
        out_shape=jax.ShapeDtypeStruct((M, F), x.dtype),
        grid_spec=pltpu.PrefetchScalarGridSpec(
            num_scalar_prefetch=0,
            grid=grid,
            in_specs=[
                pl.BlockSpec((tm, F), lambda i: (i, 0)),   # x rows for this step
                pl.BlockSpec((1, F), lambda i: (0, 0)),    # mean (resident)
                pl.BlockSpec((1, F), lambda i: (0, 0)),    # inv_scale (resident)
            ],
            out_specs=pl.BlockSpec((tm, F), lambda i: (i, 0)),
        ),
        compiler_params=pltpu.CompilerParams(
            dimension_semantics=("parallel",),
        ),
    )(xf, mean_f, inv_scale_f)

    return out.reshape(B, S, C, N)


if __name__ == "__main__":
    # Module shapes: LearnedInputNormalizer(in_channels, num_nodes)
    batch, sentence, in_channels, num_nodes = 2, 8, 4, 16

    key = jax.random.PRNGKey(0)
    kx, km, ks = jax.random.split(key, 3)

    x = jax.random.normal(kx, (batch, sentence, in_channels, num_nodes), dtype=jnp.float32)

    # Deterministic "learned" parameters (PyTorch init is zeros/ones; perturb a
    # little so the kernel actually exercises the broadcast arithmetic).
    mean = jnp.zeros((in_channels, num_nodes), jnp.float32) + 0.1 * jax.random.normal(
        km, (in_channels, num_nodes), dtype=jnp.float32
    )
    scale = jnp.ones((in_channels, num_nodes), jnp.float32) + 0.1 * jnp.abs(
        jax.random.normal(ks, (in_channels, num_nodes), dtype=jnp.float32)
    )

    y = learned_input_normalizer(x, mean, scale)
    y = jax.block_until_ready(y)

    # Reference check in plain JAX (same broadcasting semantics as PyTorch).
    y_ref = (x - mean) / (scale + 1e-6)
    assert y.shape == x.shape
    assert jnp.allclose(y, y_ref, atol=1e-5, rtol=1e-5)

    print("KERNEL_OK")
</pallas_src>

<mosaic_0001>
module attributes {stable_mosaic.version = 11 : i64} {
  func.func @_normalizer_kernel(%arg0: i32, %arg1: memref<16x64xf32, #tpu.memory_space<vmem>>, %arg2: memref<1x64xf32, #tpu.memory_space<vmem>>, %arg3: memref<1x64xf32, #tpu.memory_space<vmem>>, %arg4: memref<16x64xf32, #tpu.memory_space<vmem>>) attributes {dimension_semantics = [#tpu.dimension_semantics<parallel>], iteration_bounds = array<i64: 1>, scalar_prefetch = 0 : i64, scratch_operands = 0 : i64, tpu.core_type = #tpu.core_type<tc>, window_params = [{transform_indices = @transform_0, window_bounds = array<i64: 16, 64>}, {pipeline_mode = #tpu.pipeline_mode<synchronous>, transform_indices = @transform_1, window_bounds = array<i64: 1, 64>}, {pipeline_mode = #tpu.pipeline_mode<synchronous>, transform_indices = @transform_2, window_bounds = array<i64: 1, 64>}, {transform_indices = @transform_3, window_bounds = array<i64: 16, 64>}]} {
    %c0 = arith.constant 0 : index
    %c0_0 = arith.constant 0 : index
    %0 = vector.load %arg1[%c0, %c0_0] : memref<16x64xf32, #tpu.memory_space<vmem>>, vector<16x64xf32>
    %c0_1 = arith.constant 0 : index
    %c0_2 = arith.constant 0 : index
    %1 = vector.load %arg2[%c0_1, %c0_2] : memref<1x64xf32, #tpu.memory_space<vmem>>, vector<1x64xf32>
    %2 = vector.broadcast %1 : vector<1x64xf32> to vector<16x64xf32>
    %3 = arith.subf %0, %2 : vector<16x64xf32>
    %c0_3 = arith.constant 0 : index
    %c0_4 = arith.constant 0 : index
    %4 = vector.load %arg3[%c0_3, %c0_4] : memref<1x64xf32, #tpu.memory_space<vmem>>, vector<1x64xf32>
    %5 = vector.broadcast %4 : vector<1x64xf32> to vector<16x64xf32>
    %6 = arith.mulf %3, %5 : vector<16x64xf32>
    %c0_5 = arith.constant 0 : index
    %c0_6 = arith.constant 0 : index
    %7 = vector.load %arg4[%c0_5, %c0_6] : memref<16x64xf32, #tpu.memory_space<vmem>>, vector<16x64xf32>
    tpu.vector_store %arg4[%c0_5, %c0_6], %6 {strides = array<i32>} : memref<16x64xf32, #tpu.memory_space<vmem>>, vector<16x64xf32>,
    return
  }
  func.func @transform_0(%arg0: i32) -> (i32, i32) {
    %c0_i32 = arith.constant 0 : i32
    %c0_i32_0 = arith.constant 0 : i32
    return %arg0, %c0_i32 : i32, i32
  }
  func.func @transform_1(%arg0: i32) -> (i32, i32) {
    %c0_i32 = arith.constant 0 : i32
    %c0_i32_0 = arith.constant 0 : i32
    %c0_i32_1 = arith.constant 0 : i32
    return %c0_i32, %c0_i32_0 : i32, i32
  }
  func.func @transform_2(%arg0: i32) -> (i32, i32) {
    %c0_i32 = arith.constant 0 : i32
    %c0_i32_0 = arith.constant 0 : i32
    %c0_i32_1 = arith.constant 0 : i32
    return %c0_i32, %c0_i32_0 : i32, i32
  }
  func.func @transform_3(%arg0: i32) -> (i32, i32) {
    %c0_i32 = arith.constant 0 : i32
    %c0_i32_0 = arith.constant 0 : i32
    return %arg0, %c0_i32 : i32, i32
  }
}

</mosaic_0001>

<llo_original>
// kernel: tpu_custom_call.1
$region0: #{tpu_custom_call.1}
  #allocation0 [shape = 'u32[]', space=smem, size = 0x4, offset = 0x4, fixed_abs, tag = 'smem constant byte address 0x4 - core index']
  #allocation1 [shape = 'u32[144,128]{1,0:T(1,128)}', space=vmem, size = 0x12000, scoped, tag = 'internal scratch']
  %s0 = inlined_call_operand.hbm [shape: f32[16,64], index: 0, kind: input, shape index: {}]
  %s1 = inlined_call_operand.vmem [shape: f32[1,64], index: 1, kind: input, shape index: {}]
  %s2 = inlined_call_operand.vmem [shape: f32[1,64], index: 2, kind: input, shape index: {}]
  %s3 = inlined_call_operand.hbm [shape: f32[16,64], index: 3, kind: output, shape index: {}]
  %s4 = sld [smem:[#allocation0]]
  $region26: #{tpu_custom_call.1} parent=0
    _
  %s6 = ssub.s32 1, %s4
  %s7 = scalar_select 0, %s6, %s4
  $region1: #{tpu_custom_call.1} parent=0
    #allocation2 [shape = 'u8[8192]{0}', space=vmem, size = 0x2000, scoped, tag = 'input window, operand 0, single buffered']
    #allocation3 [shape = 's32[1]{0}', space=sflag, size = 0x4, scoped, tag = 'scoped memory for tpu_custom_call.1']
    #allocation4 [shape = 's32[1]{0}', space=sflag, size = 0x4, scoped, tag = 'scoped memory for tpu_custom_call.1']
    #allocation5 [shape = 'u8[8192]{0}', space=vmem, size = 0x2000, scoped, tag = 'output window, operand 0, single buffered']
    %8 = vsyncpa [#allocation3], 0
    %9 = vsyncpa [#allocation4], 0
    // Predicated region
    $region2: #{tpu_custom_call.1} parent=1 // pred_check
      _
    $region3: #{tpu_custom_call.1} parent=1 // pred_check_branch
      %11 = sbr.rel (0) target = $region5
    $region4: #{tpu_custom_call.1} parent=1 // pred_region
      %s13 = ssub.s32 256, 256
      %14 = vsyncadd [#allocation3], %s13
      %s15 = sshll.u32 [#allocation2], 4
      %s16 = int_to_ptr.vmem [resolvable:$true] %s15
      %21 = dma.hbm_to_vmem [thread:$0]  %s0, 256, %s16, [#allocation3], 128, 128, 8
    $region5: #{tpu_custom_call.1} parent=1 // pred_fallthru
      _
    // Predicated region
    $region6: #{tpu_custom_call.1} parent=1 // pred_check
      _
    $region7: #{tpu_custom_call.1} parent=1 // pred_check_branch
      %23 = sbr.rel (0) target = $region9
    $region8: #{tpu_custom_call.1} parent=1 // pred_region
      _
    $region9: #{tpu_custom_call.1} parent=1 // pred_fallthru
      _
    // Predicated region
    $region10: #{tpu_custom_call.1} parent=1 // pred_check
      _
    $region11: #{tpu_custom_call.1} parent=1 // pred_check_branch
      %25 = sbr.rel (0) target = $region13
    $region12: #{tpu_custom_call.1} parent=1 // pred_region
      _
    $region13: #{tpu_custom_call.1} parent=1 // pred_fallthru
      _
    // Predicated region
    $region14: #{tpu_custom_call.1} parent=1 // pred_check
      _
    $region15: #{tpu_custom_call.1} parent=1 // pred_check_branch
      %27 = sbr.rel (0) target = $region17
    $region16: #{tpu_custom_call.1} parent=1 // pred_region
      %28 = dma.done [#allocation3], 256
    $region17: #{tpu_custom_call.1} parent=1 // pred_fallthru
      _
    %v29 = vld [vmem:[#allocation2] sm:$0xff]
    %v30 = vld [vmem:[#allocation2 + $0x8] sm:$0xff]
    %v31 = vld [vmem:[%s1] sm:$0x1]
    %v33 = vlaneseq
    %v34 = vshrl.u32 %v33, 7
    %v35 = vsub.s32 0, %v34
    %v36 = vrot.slane %v31, %v35
    %v38 = vsub.f32 %v29, %v36
    %v39 = vsub.f32 %v30, %v36
    %v40 = vld [vmem:[%s2] sm:$0x1]
    %v42 = vlaneseq
    %v43 = vshrl.u32 %v42, 7
    %v44 = vsub.s32 0, %v43
    %v45 = vrot.slane %v40, %v44
    %v47 = vmul.f32 %v38, %v45
    %v48 = vmul.f32 %v39, %v45
    %vm49 = vcmask 523264
    %50 = vst.msk [vmem:[#allocation5] sm:$0xff] %vm49, %v47
    %51 = vst.msk [vmem:[#allocation5 + $0x8] sm:$0xff] %vm49, %v48
    // Predicated region
    $region18: #{tpu_custom_call.1} parent=1 // pred_check
      _
    $region19: #{tpu_custom_call.1} parent=1 // pred_check_branch
      %53 = sbr.rel (0) target = $region21
    $region20: #{tpu_custom_call.1} parent=1 // pred_region
      %s55 = ssub.s32 256, 256
      %56 = vsyncadd [#allocation4], %s55
      %s57 = sshll.u32 [#allocation5], 4
      %s58 = int_to_ptr.vmem [resolvable:$true] %s57
      %63 = dma.vmem_to_hbm [thread:$0]  %s58, 256, %s3, [#allocation4], 128, 128, 8
    $region21: #{tpu_custom_call.1} parent=1 // pred_fallthru
      _
    // Predicated region
    $region22: #{tpu_custom_call.1} parent=1 // pred_check
      _
    $region23: #{tpu_custom_call.1} parent=1 // pred_check_branch
      %65 = sbr.rel (0) target = $region25
    $region24: #{tpu_custom_call.1} parent=1 // pred_region
      %66 = dma.done [#allocation4], 256
    $region25: #{tpu_custom_call.1} parent=1 // pred_fallthru
      _
    %67 = vsyncpa [#allocation3], 1
    %68 = vsyncpa [#allocation4], 1

</llo_original>
